<compile_context>
chip_gen: v5e
topology: v5e:2x2
jax: 0.10.0
libtpu: 0.0.40
codegen_flags: <defaults>
</compile_context>

<pallas_src>
import jax
import jax.numpy as jnp
from jax.experimental import pallas as pl
from jax.experimental.pallas import tpu as pltpu


def make_pe(d_model: int, max_len: int, dtype=jnp.float32) -> jnp.ndarray:
    """Sinusoidal positional-encoding buffer, shape (max_len, 1, d_model)."""
    assert d_model % 2 == 0, "d_model must be even (matches the PyTorch module)"
    position = jnp.arange(0, max_len, dtype=jnp.float32)[:, None]            # (L, 1)
    div_term = jnp.exp(
        jnp.arange(0, d_model, 2, dtype=jnp.float32)
        * (-jnp.log(jnp.float32(10000.0)) / d_model)
    )                                                                         # (D/2,)
    angles = position * div_term                                              # (L, D/2)
    # Interleave: pe[:, 0::2] = sin, pe[:, 1::2] = cos
    pe = jnp.stack([jnp.sin(angles), jnp.cos(angles)], axis=-1)               # (L, D/2, 2)
    pe = pe.reshape(max_len, d_model)
    return pe[:, None, :].astype(dtype)                                       # (L, 1, D)


def _add_pe_kernel(x_ref, pe_ref, o_ref):
    # x_ref: (ts, B, D) VMEM tile; pe_ref: (ts, 1, D) -> broadcast over batch.
    o_ref[...] = x_ref[...] + pe_ref[...]


def _device_kind() -> str:
    try:
        return jax.devices()[0].device_kind.lower()
    except Exception:
        return ""


def _num_tensorcores() -> int:
    """v7x packs 2 TensorCores per chip; v5e/v6e have 1 (device_kind heuristic)."""
    kind = _device_kind()
    return 2 if ("v7" in kind or "7x" in kind) else 1


def _vmem_capacity_bytes(num_cores: int) -> int:
    cap = 0
    try:
        info = pltpu.get_tpu_info()
        cap = int(getattr(info, "vmem_capacity_bytes", 0) or 0)
    except Exception:
        cap = 0
    if cap <= 0:
        cap = 64 << 20          # conservative fallback: v7x per-TC VMEM
    if num_cores > 1:
        cap = min(cap, 64 << 20)  # v7x per-TC figure even if info is per-chip
    return min(cap, 128 << 20)


def _seq_dimension_semantics(num_cores: int, core_parallel):
    """CORE_PARALLEL only changes codegen on multi-TC chips (v7x)."""
    if core_parallel is None:
        core_parallel = num_cores > 1
    if core_parallel:
        cp = getattr(pltpu, "CORE_PARALLEL", None)
        if cp is not None:
            return (cp,)
    return ("parallel",)


def _choose_seq_tile(S, B, D, itemsize, *, num_cores, vmem_bytes,
                     target_x_tile_bytes=4 << 20):
    """Pick the sequence tile.

    Big enough that each grid step streams ~4 MiB of *real* x data (hides the
    ~0.35 us per-step overhead; tiled-add measurements saturate ~85% of the
    HBM roofline from ~1-4 MiB tiles), small enough that the double-buffered
    pipeline footprint -- counted with sublane/lane padding, which is what the
    tiles actually occupy in VMEM -- stays under ~3/8 of this generation's
    VMEM capacity.
    """
    min_sublane = max(8, 32 // itemsize)              # 8 for f32, 16 for bf16
    b_pad = -(-B // min_sublane) * min_sublane        # sublane padding of the (B, D) slab
    d_pad = -(-D // 128) * 128                        # lane padding
    x_row_real = B * D * itemsize                     # HBM bytes actually streamed / seq pos
    x_row_pad = b_pad * d_pad * itemsize              # padded VMEM bytes / seq pos (x tile)
    pe_row_pad = min_sublane * d_pad * itemsize       # (ts, 1, D) block: sublane dim pads up
    fp_row = 2 * (2 * x_row_pad + pe_row_pad)         # double-buffered x + out + pe
    footprint_cap = (vmem_bytes * 3) // 8             # 24 MiB @ 64 MiB VMEM, 48 MiB @ 128 MiB
    ts = min(target_x_tile_bytes // max(x_row_real, 1),
             footprint_cap // max(fp_row, 1))
    ts = int(max(1, min(ts, S)))
    # Multi-TensorCore chips (v7x): keep >= num_cores grid steps so the
    # CORE_PARALLEL axis has work for every core.  On single-TC chips this
    # split is pure overhead, so it is skipped.
    if num_cores > 1 and S >= num_cores:
        per_core = -(-S // num_cores)
        if ts > per_core:
            ts = per_core
    return ts


def positional_encoding_forward(x: jnp.ndarray, pe: jnp.ndarray, *,
                                donate_x: bool = False,
                                seq_tile: int | None = None,
                                core_parallel: bool | None = None) -> jnp.ndarray:
    """x: (S, B, D); pe: (max_len, 1, D). Returns x + pe[:S] (broadcast over B)."""
    S, B, D = x.shape
    max_len = pe.shape[0]
    assert pe.shape == (max_len, 1, D), "pe must be (max_len, 1, d_model)"
    assert S <= max_len, "sequence length exceeds max_len"

    # Match pe's dtype to x (no-op when make_pe was built in the model dtype);
    # avoids streaming wider pe bytes and mixed-dtype promotion in the kernel.
    if pe.dtype != x.dtype:
        pe = pe.astype(x.dtype)

    num_cores = _num_tensorcores()
    vmem_bytes = _vmem_capacity_bytes(num_cores)
    itemsize = jnp.dtype(x.dtype).itemsize

    if seq_tile is None:
        ts = _choose_seq_tile(S, B, D, itemsize,
                              num_cores=num_cores, vmem_bytes=vmem_bytes)
    else:
        ts = int(seq_tile)
    ts = int(max(1, min(ts, S)))
    grid = (pl.cdiv(S, ts),)

    def build(semantics):
        return pl.pallas_call(
            _add_pe_kernel,
            out_shape=jax.ShapeDtypeStruct((S, B, D), x.dtype),
            grid_spec=pltpu.PrefetchScalarGridSpec(
                num_scalar_prefetch=0,
                grid=grid,
                in_specs=[
                    # x: full (B, D) slab per tile; last two block dims == full dims.
                    pl.BlockSpec((ts, B, D), lambda i: (i, 0, 0)),
                    # pe passed un-sliced: only blocks [0, cdiv(S, ts)) are ever
                    # fetched, so no pe[:S] pre-slice copy is materialized in HBM.
                    pl.BlockSpec((ts, 1, D), lambda i: (i, 0, 0)),
                ],
                out_specs=pl.BlockSpec((ts, B, D), lambda i: (i, 0, 0)),
            ),
            compiler_params=pltpu.CompilerParams(
                dimension_semantics=semantics,
                # 3/4 of this generation's VMEM: above the 16/32 MiB scoped
                # defaults so large tiles compile, below physical capacity.
                vmem_limit_bytes=(vmem_bytes * 3) // 4,
            ),
            # Optional in-place-style add: reuse x's HBM buffer for the output
            # (caller should donate x under jit for this to pay off).
            input_output_aliases={0: 0} if donate_x else {},
        )

    semantics = _seq_dimension_semantics(num_cores, core_parallel)
    try:
        return build(semantics)(x, pe)
    except Exception:
        if semantics == ("parallel",):
            raise
        # CORE_PARALLEL rejected by this runtime/chip: fall back to the plain
        # single-core-safe semantics (effective in eager mode).
        return build(("parallel",))(x, pe)


if __name__ == "__main__":
    key = jax.random.PRNGKey(0)

    # 1) Layout-friendly small shape: lane-dense d_model (multiple of 128) and
    #    sublane-dense batch (multiple of 8 for f32) -> unmasked vector stores.
    d_model, max_len, seq, batch = 128, 64, 16, 8
    x = jax.random.normal(key, (seq, batch, d_model), dtype=jnp.float32)
    pe = make_pe(d_model, max_len, dtype=x.dtype)
    out = jax.block_until_ready(positional_encoding_forward(x, pe))
    ref = x + pe[:seq]
    assert out.shape == (seq, batch, d_model)
    assert jnp.allclose(out, ref, atol=1e-6), "mismatch vs reference (dense shape)"

    # 2) Awkward small shape (B=2, D=32, seq not divisible by the tile, last pe
    #    block partially past max_len): exercises clamped/masked partial blocks.
    d_model2, max_len2, seq2, batch2 = 32, 8, 7, 2
    x2 = jax.random.normal(jax.random.PRNGKey(0), (seq2, batch2, d_model2),
                           dtype=jnp.float32)
    pe2 = make_pe(d_model2, max_len2, dtype=x2.dtype)
    out2 = jax.block_until_ready(positional_encoding_forward(x2, pe2, seq_tile=3))
    ref2 = x2 + pe2[:seq2]
    assert out2.shape == (seq2, batch2, d_model2)
    assert jnp.allclose(out2, ref2, atol=1e-6), "mismatch vs reference (ragged shape)"

    print("KERNEL_OK")
</pallas_src>

<mosaic_0001>
module attributes {stable_mosaic.version = 11 : i64} {
  func.func @_add_pe_kernel(%arg0: i32, %arg1: memref<16x8x128xf32, #tpu.memory_space<vmem>>, %arg2: memref<16x1x128xf32, #tpu.memory_space<vmem>>, %arg3: memref<16x8x128xf32, #tpu.memory_space<vmem>>) attributes {dimension_semantics = [#tpu.dimension_semantics<parallel>], iteration_bounds = array<i64: 1>, scalar_prefetch = 0 : i64, scratch_operands = 0 : i64, tpu.core_type = #tpu.core_type<tc>, window_params = [{transform_indices = @transform_0, window_bounds = array<i64: 16, 8, 128>}, {transform_indices = @transform_1, window_bounds = array<i64: 16, 1, 128>}, {transform_indices = @transform_2, window_bounds = array<i64: 16, 8, 128>}]} {
    %c0 = arith.constant 0 : index
    %c0_0 = arith.constant 0 : index
    %c0_1 = arith.constant 0 : index
    %0 = vector.load %arg1[%c0, %c0_0, %c0_1] : memref<16x8x128xf32, #tpu.memory_space<vmem>>, vector<16x8x128xf32>
    %c0_2 = arith.constant 0 : index
    %c0_3 = arith.constant 0 : index
    %c0_4 = arith.constant 0 : index
    %1 = vector.load %arg2[%c0_2, %c0_3, %c0_4] : memref<16x1x128xf32, #tpu.memory_space<vmem>>, vector<16x1x128xf32>
    %2 = vector.broadcast %1 : vector<16x1x128xf32> to vector<16x8x128xf32>
    %3 = arith.addf %0, %2 : vector<16x8x128xf32>
    %c0_5 = arith.constant 0 : index
    %c0_6 = arith.constant 0 : index
    %c0_7 = arith.constant 0 : index
    %4 = vector.load %arg3[%c0_5, %c0_6, %c0_7] : memref<16x8x128xf32, #tpu.memory_space<vmem>>, vector<16x8x128xf32>
    tpu.vector_store %arg3[%c0_5, %c0_6, %c0_7], %3 {strides = array<i32>} : memref<16x8x128xf32, #tpu.memory_space<vmem>>, vector<16x8x128xf32>,
    return
  }
  func.func @transform_0(%arg0: i32) -> (i32, i32, i32) {
    %c0_i32 = arith.constant 0 : i32
    %c0_i32_0 = arith.constant 0 : i32
    %c0_i32_1 = arith.constant 0 : i32
    return %arg0, %c0_i32, %c0_i32_0 : i32, i32, i32
  }
  func.func @transform_1(%arg0: i32) -> (i32, i32, i32) {
    %c0_i32 = arith.constant 0 : i32
    %c0_i32_0 = arith.constant 0 : i32
    %c0_i32_1 = arith.constant 0 : i32
    return %arg0, %c0_i32, %c0_i32_0 : i32, i32, i32
  }
  func.func @transform_2(%arg0: i32) -> (i32, i32, i32) {
    %c0_i32 = arith.constant 0 : i32
    %c0_i32_0 = arith.constant 0 : i32
    %c0_i32_1 = arith.constant 0 : i32
    return %arg0, %c0_i32, %c0_i32_0 : i32, i32, i32
  }
}

</mosaic_0001>

<llo_original>
// kernel: tpu_custom_call.1
$region0: #{tpu_custom_call.1}
  #allocation0 [shape = 'u32[]', space=smem, size = 0x4, offset = 0x4, fixed_abs, tag = 'smem constant byte address 0x4 - core index']
  #allocation1 [shape = 'u32[72,128]{1,0:T(1,128)}', space=vmem, size = 0x9000, scoped, tag = 'internal scratch']
  %s0 = inlined_call_operand.hbm [shape: f32[16,8,128], index: 0, kind: input, shape index: {}]
  %s1 = inlined_call_operand.hbm [shape: f32[64,1,128], index: 1, kind: input, shape index: {}]
  %s2 = inlined_call_operand.hbm [shape: f32[16,8,128], index: 2, kind: output, shape index: {}]
  %s3 = sld [smem:[#allocation0]]
  $region26: #{tpu_custom_call.1} parent=0
    _
  %s5 = ssub.s32 1, %s3
  %s6 = scalar_select 0, %s5, %s3
  $region1: #{tpu_custom_call.1} parent=0
    #allocation2 [shape = 'u8[65536]{0}', space=vmem, size = 0x10000, scoped, tag = 'input window, operand 0, single buffered']
    #allocation3 [shape = 's32[1]{0}', space=sflag, size = 0x4, scoped, tag = 'scoped memory for tpu_custom_call.1']
    #allocation4 [shape = 's32[1]{0}', space=sflag, size = 0x4, scoped, tag = 'scoped memory for tpu_custom_call.1']
    #allocation5 [shape = 'u8[8192]{0}', space=vmem, size = 0x2000, scoped, tag = 'input window, operand 1, single buffered']
    #allocation6 [shape = 's32[1]{0}', space=sflag, size = 0x4, scoped, tag = 'scoped memory for tpu_custom_call.1']
    #allocation7 [shape = 'u8[65536]{0}', space=vmem, size = 0x10000, scoped, tag = 'output window, operand 0, single buffered']
    %7 = vsyncpa [#allocation3], 0
    %8 = vsyncpa [#allocation6], 0
    %9 = vsyncpa [#allocation4], 0
    // Predicated region
    $region2: #{tpu_custom_call.1} parent=1 // pred_check
      _
    $region3: #{tpu_custom_call.1} parent=1 // pred_check_branch
      %11 = sbr.rel (0) target = $region5
    $region4: #{tpu_custom_call.1} parent=1 // pred_region
      %13 = vsyncadd [#allocation3], 0
      %s14 = sshll.u32 %s0, 4
      %s15 = int_to_ptr.hbm [resolvable:$true] %s14
      %s16 = sshll.u32 [#allocation2], 4
      %s17 = int_to_ptr.vmem [resolvable:$true] %s16
      %22 = dma.hbm_to_vmem [thread:$0]  %s15, 2048, %s17, [#allocation3], 128, 128, 8
    $region5: #{tpu_custom_call.1} parent=1 // pred_fallthru
      _
    // Predicated region
    $region6: #{tpu_custom_call.1} parent=1 // pred_check
      _
    $region7: #{tpu_custom_call.1} parent=1 // pred_check_branch
      %24 = sbr.rel (0) target = $region9
    $region8: #{tpu_custom_call.1} parent=1 // pred_region
      %26 = vsyncadd [#allocation6], 0
      %s27 = sshll.u32 %s1, 4
      %s28 = int_to_ptr.hbm [resolvable:$true] %s27
      %s29 = sshll.u32 [#allocation5], 4
      %s30 = int_to_ptr.vmem [resolvable:$true] %s29
      %35 = dma.hbm_to_vmem [thread:$0]  %s28, 256, %s30, [#allocation6], 16, 16, 1
    $region9: #{tpu_custom_call.1} parent=1 // pred_fallthru
      _
    // Predicated region
    $region10: #{tpu_custom_call.1} parent=1 // pred_check
      _
    $region11: #{tpu_custom_call.1} parent=1 // pred_check_branch
      %37 = sbr.rel (0) target = $region13
    $region12: #{tpu_custom_call.1} parent=1 // pred_region
      %39 = dma.done [#allocation3], 2048
    $region13: #{tpu_custom_call.1} parent=1 // pred_fallthru
      _
    // Predicated region
    $region14: #{tpu_custom_call.1} parent=1 // pred_check
      _
    $region15: #{tpu_custom_call.1} parent=1 // pred_check_branch
      %41 = sbr.rel (0) target = $region17
    $region16: #{tpu_custom_call.1} parent=1 // pred_region
      %43 = dma.done [#allocation6], 256
    $region17: #{tpu_custom_call.1} parent=1 // pred_fallthru
      _
    %v44 = vld [vmem:[#allocation2] sm:$0xff]
    %v45 = vld [vmem:[#allocation2 + $0x8] sm:$0xff]
    %v46 = vld [vmem:[#allocation2 + $0x10] sm:$0xff]
    %v47 = vld [vmem:[#allocation2 + $0x18] sm:$0xff]
    %v48 = vld [vmem:[#allocation2 + $0x20] sm:$0xff]
    %v49 = vld [vmem:[#allocation2 + $0x28] sm:$0xff]
    %v50 = vld [vmem:[#allocation2 + $0x30] sm:$0xff]
    %v51 = vld [vmem:[#allocation2 + $0x38] sm:$0xff]
    %v52 = vld [vmem:[#allocation2 + $0x40] sm:$0xff]
    %v53 = vld [vmem:[#allocation2 + $0x48] sm:$0xff]
    %v54 = vld [vmem:[#allocation2 + $0x50] sm:$0xff]
    %v55 = vld [vmem:[#allocation2 + $0x58] sm:$0xff]
    %v56 = vld [vmem:[#allocation2 + $0x60] sm:$0xff]
    %v57 = vld [vmem:[#allocation2 + $0x68] sm:$0xff]
    %v58 = vld [vmem:[#allocation2 + $0x70] sm:$0xff]
    %v59 = vld [vmem:[#allocation2 + $0x78] sm:$0xff]
    %v60 = vld [vmem:[#allocation5] sm:$0x1]
    %v61 = vld [vmem:[#allocation5 + $0x1] sm:$0x1]
    %v62 = vld [vmem:[#allocation5 + $0x2] sm:$0x1]
    %v63 = vld [vmem:[#allocation5 + $0x3] sm:$0x1]
    %v64 = vld [vmem:[#allocation5 + $0x4] sm:$0x1]
    %v65 = vld [vmem:[#allocation5 + $0x5] sm:$0x1]
    %v66 = vld [vmem:[#allocation5 + $0x6] sm:$0x1]
    %v67 = vld [vmem:[#allocation5 + $0x7] sm:$0x1]
    %v68 = vld [vmem:[#allocation5 + $0x8] sm:$0x1]
    %v69 = vld [vmem:[#allocation5 + $0x9] sm:$0x1]
    %v70 = vld [vmem:[#allocation5 + $0xa] sm:$0x1]
    %v71 = vld [vmem:[#allocation5 + $0xb] sm:$0x1]
    %v72 = vld [vmem:[#allocation5 + $0xc] sm:$0x1]
    %v73 = vld [vmem:[#allocation5 + $0xd] sm:$0x1]
    %v74 = vld [vmem:[#allocation5 + $0xe] sm:$0x1]
    %v75 = vld [vmem:[#allocation5 + $0xf] sm:$0x1]
    %v92 = vperm.slane %v60, 0
    %v93 = vperm.slane %v61, 0
    %v94 = vperm.slane %v62, 0
    %v95 = vperm.slane %v63, 0
    %v96 = vperm.slane %v64, 0
    %v97 = vperm.slane %v65, 0
    %v98 = vperm.slane %v66, 0
    %v99 = vperm.slane %v67, 0
    %v100 = vperm.slane %v68, 0
    %v101 = vperm.slane %v69, 0
    %v102 = vperm.slane %v70, 0
    %v103 = vperm.slane %v71, 0
    %v104 = vperm.slane %v72, 0
    %v105 = vperm.slane %v73, 0
    %v106 = vperm.slane %v74, 0
    %v107 = vperm.slane %v75, 0
    %v124 = vadd.f32 %v44, %v92
    %v125 = vadd.f32 %v45, %v93
    %v126 = vadd.f32 %v46, %v94
    %v127 = vadd.f32 %v47, %v95
    %v128 = vadd.f32 %v48, %v96
    %v129 = vadd.f32 %v49, %v97
    %v130 = vadd.f32 %v50, %v98
    %v131 = vadd.f32 %v51, %v99
    %v132 = vadd.f32 %v52, %v100
    %v133 = vadd.f32 %v53, %v101
    %v134 = vadd.f32 %v54, %v102
    %v135 = vadd.f32 %v55, %v103
    %v136 = vadd.f32 %v56, %v104
    %v137 = vadd.f32 %v57, %v105
    %v138 = vadd.f32 %v58, %v106
    %v139 = vadd.f32 %v59, %v107
    %140 = vst [vmem:[#allocation7] sm:$0xff] %v124
    %141 = vst [vmem:[#allocation7 + $0x8] sm:$0xff] %v125
    %142 = vst [vmem:[#allocation7 + $0x10] sm:$0xff] %v126
    %143 = vst [vmem:[#allocation7 + $0x18] sm:$0xff] %v127
    %144 = vst [vmem:[#allocation7 + $0x20] sm:$0xff] %v128
    %145 = vst [vmem:[#allocation7 + $0x28] sm:$0xff] %v129
    %146 = vst [vmem:[#allocation7 + $0x30] sm:$0xff] %v130
    %147 = vst [vmem:[#allocation7 + $0x38] sm:$0xff] %v131
    %148 = vst [vmem:[#allocation7 + $0x40] sm:$0xff] %v132
    %149 = vst [vmem:[#allocation7 + $0x48] sm:$0xff] %v133
    %150 = vst [vmem:[#allocation7 + $0x50] sm:$0xff] %v134
    %151 = vst [vmem:[#allocation7 + $0x58] sm:$0xff] %v135
    %152 = vst [vmem:[#allocation7 + $0x60] sm:$0xff] %v136
    %153 = vst [vmem:[#allocation7 + $0x68] sm:$0xff] %v137
    %154 = vst [vmem:[#allocation7 + $0x70] sm:$0xff] %v138
    %155 = vst [vmem:[#allocation7 + $0x78] sm:$0xff] %v139
    // Predicated region
    $region18: #{tpu_custom_call.1} parent=1 // pred_check
      _
    $region19: #{tpu_custom_call.1} parent=1 // pred_check_branch
      %157 = sbr.rel (0) target = $region21
    $region20: #{tpu_custom_call.1} parent=1 // pred_region
      %159 = vsyncadd [#allocation4], 0
      %s160 = sshll.u32 [#allocation7], 4
      %s161 = int_to_ptr.vmem [resolvable:$true] %s160
      %s162 = sshll.u32 %s2, 4
      %s163 = int_to_ptr.hbm [resolvable:$true] %s162
      %168 = dma.vmem_to_hbm [thread:$0]  %s161, 2048, %s163, [#allocation4], 128, 128, 8
    $region21: #{tpu_custom_call.1} parent=1 // pred_fallthru
      _
    // Predicated region
    $region22: #{tpu_custom_call.1} parent=1 // pred_check
      _
    $region23: #{tpu_custom_call.1} parent=1 // pred_check_branch
      %170 = sbr.rel (0) target = $region25
    $region24: #{tpu_custom_call.1} parent=1 // pred_region
      %172 = dma.done [#allocation4], 2048
    $region25: #{tpu_custom_call.1} parent=1 // pred_fallthru
      _
    %173 = vsyncpa [#allocation3], 1
    %174 = vsyncpa [#allocation6], 1
    %175 = vsyncpa [#allocation4], 1

</llo_original>
